<compile_context>
chip_gen: v5e
topology: v5e:2x2
jax: 0.10.0
libtpu: 0.0.40
codegen_flags: <defaults>
</compile_context>

<pallas_src>
import functools

import jax
import jax.numpy as jnp
from jax.experimental import pallas as pl
from jax.experimental.pallas import tpu as pltpu


def _patch_embed_kernel(x_ref, w_ref, b_ref, o_ref):
    # x_ref: (tm, K_pad) patch rows, w_ref: (K_pad, E_pad), b_ref: (1, E_pad),
    # o_ref: (tm, E_pad).  MXU matmul with f32 accumulation; bias added in f32.
    acc = jnp.dot(x_ref[...], w_ref[...], preferred_element_type=jnp.float32)
    o_ref[...] = (acc + b_ref[...].astype(jnp.float32)).astype(o_ref.dtype)


def _round_up(v, m):
    return ((v + m - 1) // m) * m


def _vmem_capacity_bytes():
    try:
        return int(pltpu.get_tpu_info().vmem_capacity_bytes)
    except Exception:
        return 64 * 1024 * 1024  # conservative: v7x per-TensorCore VMEM


def _choose_tm(m_pad, k_pad, e_pad, in_bytes, out_bytes, vmem_budget_bytes):
    """Largest M-tile whose double-buffered footprint fits the budget."""
    # Resident (constant index_map) weight + bias, conservatively counted 2x.
    fixed = 2 * (k_pad * e_pad * in_bytes + e_pad * 4)
    # Per patch row: double-buffered input tile row + output tile row.
    per_row = 2 * (k_pad * in_bytes + e_pad * out_bytes)
    tm = (vmem_budget_bytes - fixed) // per_row
    tm = max(16, min(int(tm), 4096))
    # Keep >= 4 grid steps for large problems: 2 TensorCores (v7x megacore)
    # each still get >= 2 steps, preserving per-core DMA/compute overlap.
    if m_pad >= 4 * 256:
        tm = min(tm, m_pad // 4)
    tm = min(tm, m_pad)
    if tm >= 128:
        tm = (tm // 128) * 128     # MXU-friendly on v5e (128) and v6e/v7x
    else:
        tm = max(16, (tm // 16) * 16)   # bf16 sublane pack
    return max(8, min(tm, m_pad))


def patch_embed(x, weight, bias, patch_size, *, tm=None, use_bf16=True,
                out_dtype=None, vmem_budget_bytes=None):
    """x: (B, C, H, W); weight: (E, C, P, P); bias: (E,).  Returns (B, N, E)."""
    B, C, H, W = x.shape
    E = weight.shape[0]
    P = patch_size
    assert H % P == 0 and W % P == 0
    Hp, Wp = H // P, W // P
    N = Hp * Wp
    M = B * N
    K = C * P * P
    if out_dtype is None:
        out_dtype = x.dtype

    compute_dtype = jnp.bfloat16 if use_bf16 else x.dtype
    in_bytes = jnp.dtype(compute_dtype).itemsize
    out_bytes = jnp.dtype(out_dtype).itemsize

    # Lane-dense, MXU-friendly padding: E (output lanes) and K (input lanes /
    # weight sublanes) both to multiples of 128.  Zero padding keeps the dot
    # exact; pads are sliced off / never read back.
    E_pad = _round_up(E, 128)
    K_pad = _round_up(K, 128)

    vmem_capacity = _vmem_capacity_bytes()
    if vmem_budget_bytes is None:
        vmem_budget_bytes = int(0.45 * vmem_capacity)

    # Pick the M tile, then pad M up to a multiple of it (no divisibility req).
    if tm is None:
        tm = _choose_tm(_round_up(M, 8), K_pad, E_pad, in_bytes, out_bytes,
                        vmem_budget_bytes)
    else:
        tm = max(8, _round_up(int(tm), 8))
        tm = min(tm, _round_up(M, 8))
    M_pad = _round_up(M, tm)
    grid_m = M_pad // tm

    # --- im2col (patchify) --------------------------------------------------
    # Cast first so any materialized intermediate is half-width; with
    # allow_input_fusion below, XLA may fuse this whole chain into the pallas
    # input and skip the HBM round-trip entirely.
    xc = x.astype(compute_dtype)
    patches = xc.reshape(B, C, Hp, P, Wp, P)
    patches = patches.transpose(0, 2, 4, 1, 3, 5).reshape(M, K)
    if M_pad != M or K_pad != K:
        patches = jnp.pad(patches, ((0, M_pad - M), (0, K_pad - K)))

    # Conv2d weight (E, C, P, P) flattened over (C, P, P) -> (K_pad, E_pad).
    w_mat = weight.reshape(E, K).T.astype(compute_dtype)
    b_vec = bias.astype(jnp.float32)
    if K_pad != K or E_pad != E:
        w_mat = jnp.pad(w_mat, ((0, K_pad - K), (0, E_pad - E)))
        b_vec = jnp.pad(b_vec, ((0, E_pad - E),))
    b_mat = b_vec.reshape(1, E_pad)

    # Derived VMEM limit: actual footprint + slack, capped by device capacity.
    footprint = (2 * tm * (K_pad * in_bytes + E_pad * out_bytes)
                 + 2 * (K_pad * E_pad * in_bytes + E_pad * 4))
    vmem_limit = min(max(int(footprint * 1.25) + (2 << 20), 16 << 20),
                     int(0.85 * vmem_capacity))

    cost = pl.CostEstimate(
        flops=2 * M_pad * K_pad * E_pad,
        transcendentals=0,
        bytes_accessed=(M_pad * K_pad * in_bytes
                        + K_pad * E_pad * in_bytes
                        + M_pad * E_pad * out_bytes),
    )

    out = pl.pallas_call(
        _patch_embed_kernel,
        out_shape=jax.ShapeDtypeStruct((M_pad, E_pad), out_dtype),
        grid_spec=pltpu.PrefetchScalarGridSpec(
            num_scalar_prefetch=0,
            grid=(grid_m,),
            in_specs=[
                pl.BlockSpec((tm, K_pad), lambda i: (i, 0)),
                pl.BlockSpec((K_pad, E_pad), lambda i: (0, 0)),   # resident weight
                pl.BlockSpec((1, E_pad), lambda i: (0, 0)),       # resident bias
            ],
            out_specs=pl.BlockSpec((tm, E_pad), lambda i: (i, 0)),
        ),
        compiler_params=pltpu.CompilerParams(
            dimension_semantics=("parallel",),
            vmem_limit_bytes=vmem_limit,
            # Allow XLA to fuse the im2col producer into the patch operand so
            # the (M, K) intermediate need not round-trip through HBM.
            allow_input_fusion=[True, False, False],
        ),
        cost_estimate=cost,
    )(patches, w_mat, b_mat)

    return out[:M, :E].reshape(B, N, E)


if __name__ == "__main__":
    # Small shapes consistent with the module: B=2, in_chans=4, H=W=16,
    # patch_size=4 -> N = 16 patches, embed_dim=32.
    B, C, H, W = 2, 4, 16, 16
    P = 4
    E = 32

    key = jax.random.PRNGKey(0)
    kx, kw, kb = jax.random.split(key, 3)
    x = jax.random.normal(kx, (B, C, H, W), dtype=jnp.float32)
    weight = jax.random.normal(kw, (E, C, P, P), dtype=jnp.float32) * 0.02
    bias = jax.random.normal(kb, (E,), dtype=jnp.float32) * 0.02

    # Plain-JAX reference (same semantics as the PyTorch module).
    ref = jax.lax.conv_general_dilated(
        x, weight, window_strides=(P, P), padding="VALID",
        dimension_numbers=("NCHW", "OIHW", "NCHW"),
    ) + bias.reshape(1, E, 1, 1)
    ref = ref.reshape(B, E, -1).transpose(0, 2, 1)   # flatten(2).transpose(1,2)

    # f32 path (tight tolerance vs the reference).
    fn_f32 = jax.jit(functools.partial(patch_embed, patch_size=P, use_bf16=False))
    out_f32 = fn_f32(x, weight, bias)
    jax.block_until_ready(out_f32)
    assert out_f32.shape == (B, (H // P) * (W // P), E)
    assert jnp.allclose(out_f32, ref, atol=1e-4, rtol=1e-4)

    # Default fast path: bf16 inputs, f32 accumulation (looser tolerance).
    fn_bf16 = jax.jit(functools.partial(patch_embed, patch_size=P, use_bf16=True))
    out_bf16 = fn_bf16(x, weight, bias)
    jax.block_until_ready(out_bf16)
    assert out_bf16.shape == (B, (H // P) * (W // P), E)
    assert jnp.allclose(out_bf16, ref, atol=2e-2, rtol=2e-2)

    print("KERNEL_OK")
</pallas_src>

<mosaic_0001>
module attributes {stable_mosaic.version = 11 : i64} {
  func.func @_patch_embed_kernel(%arg0: i32, %arg1: memref<32x128xf32, #tpu.memory_space<vmem>>, %arg2: memref<128x128xf32, #tpu.memory_space<vmem>>, %arg3: memref<1x128xf32, #tpu.memory_space<vmem>>, %arg4: memref<32x128xf32, #tpu.memory_space<vmem>>) attributes {dimension_semantics = [#tpu.dimension_semantics<parallel>], iteration_bounds = array<i64: 1>, scalar_prefetch = 0 : i64, scratch_operands = 0 : i64, tpu.core_type = #tpu.core_type<tc>, window_params = [{transform_indices = @transform_0, window_bounds = array<i64: 32, 128>}, {pipeline_mode = #tpu.pipeline_mode<synchronous>, transform_indices = @transform_1, window_bounds = array<i64: 128, 128>}, {pipeline_mode = #tpu.pipeline_mode<synchronous>, transform_indices = @transform_2, window_bounds = array<i64: 1, 128>}, {transform_indices = @transform_3, window_bounds = array<i64: 32, 128>}]} {
    %c0 = arith.constant 0 : index
    %c0_0 = arith.constant 0 : index
    %0 = vector.load %arg1[%c0, %c0_0] : memref<32x128xf32, #tpu.memory_space<vmem>>, vector<32x128xf32>
    %c0_1 = arith.constant 0 : index
    %c0_2 = arith.constant 0 : index
    %1 = vector.load %arg2[%c0_1, %c0_2] : memref<128x128xf32, #tpu.memory_space<vmem>>, vector<128x128xf32>
    %cst = arith.constant dense<0.000000e+00> : vector<32x128xf32>
    %2 = tpu.matmul %0, %1, %cst {dimension_numbers = #tpu.dot_dimension_numbers<[1], [0], [0], [1], [0, 0, 1, 1], [], []>} : vector<32x128xf32>, vector<128x128xf32>, vector<32x128xf32> -> vector<32x128xf32>
    %c0_3 = arith.constant 0 : index
    %c0_4 = arith.constant 0 : index
    %3 = vector.load %arg3[%c0_3, %c0_4] : memref<1x128xf32, #tpu.memory_space<vmem>>, vector<1x128xf32>
    %4 = vector.broadcast %3 : vector<1x128xf32> to vector<32x128xf32>
    %5 = arith.addf %2, %4 : vector<32x128xf32>
    %c0_5 = arith.constant 0 : index
    %c0_6 = arith.constant 0 : index
    %6 = vector.load %arg4[%c0_5, %c0_6] : memref<32x128xf32, #tpu.memory_space<vmem>>, vector<32x128xf32>
    tpu.vector_store %arg4[%c0_5, %c0_6], %5 {strides = array<i32>} : memref<32x128xf32, #tpu.memory_space<vmem>>, vector<32x128xf32>,
    return
  }
  func.func @transform_0(%arg0: i32) -> (i32, i32) {
    %c0_i32 = arith.constant 0 : i32
    %c0_i32_0 = arith.constant 0 : i32
    return %arg0, %c0_i32 : i32, i32
  }
  func.func @transform_1(%arg0: i32) -> (i32, i32) {
    %c0_i32 = arith.constant 0 : i32
    %c0_i32_0 = arith.constant 0 : i32
    %c0_i32_1 = arith.constant 0 : i32
    return %c0_i32, %c0_i32_0 : i32, i32
  }
  func.func @transform_2(%arg0: i32) -> (i32, i32) {
    %c0_i32 = arith.constant 0 : i32
    %c0_i32_0 = arith.constant 0 : i32
    %c0_i32_1 = arith.constant 0 : i32
    return %c0_i32, %c0_i32_0 : i32, i32
  }
  func.func @transform_3(%arg0: i32) -> (i32, i32) {
    %c0_i32 = arith.constant 0 : i32
    %c0_i32_0 = arith.constant 0 : i32
    return %arg0, %c0_i32 : i32, i32
  }
}

</mosaic_0001>

<llo_original>
// kernel: patch_embed.2
$region0: #{patch_embed.2}
  #allocation0 [shape = 'u32[]', space=smem, size = 0x4, offset = 0x4, fixed_abs, tag = 'smem constant byte address 0x4 - core index']
  #allocation1 [shape = 'u32[72,128]{1,0:T(1,128)}', space=vmem, size = 0x9000, scoped, tag = 'internal scratch']
  #allocation2 [shape = 'u32[2048]{0}', space=vmem, size = 0x2000, scoped, tag = 'scoped memory for patch_embed.2']
  #allocation3 [shape = 'u32[2048]{0}', space=vmem, size = 0x2000, scoped, tag = 'scoped memory for patch_embed.2']
  #allocation4 [shape = 'u32[2048]{0}', space=vmem, size = 0x2000, scoped, tag = 'scoped memory for patch_embed.2']
  #allocation5 [shape = 'u32[2048]{0}', space=vmem, size = 0x2000, scoped, tag = 'scoped memory for patch_embed.2']
  #allocation6 [shape = 'u32[2048]{0}', space=vmem, size = 0x2000, scoped, tag = 'scoped memory for patch_embed.2']
  %s0 = inlined_call_operand.vmem [shape: f32[128,128], index: 0, kind: input, shape index: {}]
  %s1 = inlined_call_operand.vmem [shape: f32[1,128], index: 1, kind: input, shape index: {}]
  %s2 = inlined_call_operand.vmem [shape: f32[32,64], index: 2, kind: input, shape index: {}]
  %s3 = inlined_call_operand.<no memory space> [shape: f32[], index: 3, kind: input, shape index: {}]
  %s4 = inlined_call_operand.hbm [shape: f32[32,128], index: 4, kind: output, shape index: {}]
  %s5 = sld [smem:[#allocation0]]
  $region22: #{patch_embed.2} parent=0
    _
  %s7 = ssub.s32 1, %s5
  %s8 = scalar_select 0, %s7, %s5
  %v9 = vstv %s3
  $region1: #{patch_embed.2} parent=0
    #allocation7 [shape = 'u8[16384]{0}', space=vmem, size = 0x4000, scoped, tag = 'output window, operand 0, single buffered']
    #allocation8 [shape = 's32[1]{0}', space=sflag, size = 0x4, scoped, tag = 'scoped memory for patch_embed.2']
    #allocation9 [shape = 'u8[16384]{0}', space=vmem, size = 0x4000, dematerialized = true, scoped, tag = 'FusionAdapter Buffer %fusion.1 = f32[32,128]{1,0:T(8,128)} fusion(%param_2.1, %param_3), kind=kLoop, calls=%fused_computation.2.clone, metadata={op_name="jit(patch_embed)/jit(_pad)/pad" stack_frame_id=9}']
    %10 = vsyncpa [#allocation8], 0
    // Predicated region
    $region2: #{patch_embed.2} parent=1 // pred_check
      _
    $region3: #{patch_embed.2} parent=1 // pred_check_branch
      %12 = sbr.rel (0) target = $region5
    $region4: #{patch_embed.2} parent=1 // pred_region
      _
    $region5: #{patch_embed.2} parent=1 // pred_fallthru
      _
    // Predicated region
    $region6: #{patch_embed.2} parent=1 // pred_check
      _
    $region7: #{patch_embed.2} parent=1 // pred_check_branch
      %14 = sbr.rel (0) target = $region9
    $region8: #{patch_embed.2} parent=1 // pred_region
      _
    $region9: #{patch_embed.2} parent=1 // pred_fallthru
      _
    // Predicated region
    $region10: #{patch_embed.2} parent=1 // pred_check
      _
    $region11: #{patch_embed.2} parent=1 // pred_check_branch
      %16 = sbr.rel (0) target = $region13
    $region12: #{patch_embed.2} parent=1 // pred_region
      _
    $region13: #{patch_embed.2} parent=1 // pred_fallthru
      _
    %v17 = vld [vmem:[%s2] sm:$0xff]
    %v18 = vlaneseq
    %v19 = vand.u32 %v18, 127
    %vm21 = vcmp.lt.s32.totalorder %v19, 64
    %v22 = vsel %vm21, %v17, %v9
    %s24 = ssub.s32 256, 1
    %25 = vst [vmem:[#allocation9] sm:%s24] %v22
    %s26 = scalar_lea.vmem %s2, 8
    %v27 = vld [vmem:[%s26] sm:$0xff]
    %v28 = vlaneseq
    %v29 = vand.u32 %v28, 127
    %vm31 = vcmp.lt.s32.totalorder %v29, 64
    %v32 = vsel %vm31, %v27, %v9
    %s33 = scalar_lea.vmem [#allocation9], 8
    %s35 = ssub.s32 256, 1
    %36 = vst [vmem:[%s33] sm:%s35] %v32
    %s37 = scalar_lea.vmem %s2, 16
    %v38 = vld [vmem:[%s37] sm:$0xff]
    %v39 = vlaneseq
    %v40 = vand.u32 %v39, 127
    %vm42 = vcmp.lt.s32.totalorder %v40, 64
    %v43 = vsel %vm42, %v38, %v9
    %s44 = scalar_lea.vmem [#allocation9], 16
    %s46 = ssub.s32 256, 1
    %47 = vst [vmem:[%s44] sm:%s46] %v43
    %s48 = scalar_lea.vmem %s2, 24
    %v49 = vld [vmem:[%s48] sm:$0xff]
    %v50 = vlaneseq
    %v51 = vand.u32 %v50, 127
    %vm53 = vcmp.lt.s32.totalorder %v51, 64
    %v54 = vsel %vm53, %v49, %v9
    %s55 = scalar_lea.vmem [#allocation9], 24
    %s57 = ssub.s32 256, 1
    %58 = vst [vmem:[%s55] sm:%s57] %v54
    %v59 = vld [vmem:[#allocation9] sm:$0xff]
    %v60 = vld [vmem:[#allocation9 + $0x8] sm:$0xff]
    %v61 = vld [vmem:[#allocation9 + $0x10] sm:$0xff]
    %v62 = vld [vmem:[#allocation9 + $0x18] sm:$0xff]
    %v63 = vld [vmem:[%s0] sm:$0xff]
    %v64 = vld [vmem:[%s0 + $0x8] sm:$0xff]
    %v65 = vld [vmem:[%s0 + $0x10] sm:$0xff]
    %v66 = vld [vmem:[%s0 + $0x18] sm:$0xff]
    %v67 = vld [vmem:[%s0 + $0x20] sm:$0xff]
    %v68 = vld [vmem:[%s0 + $0x28] sm:$0xff]
    %v69 = vld [vmem:[%s0 + $0x30] sm:$0xff]
    %v70 = vld [vmem:[%s0 + $0x38] sm:$0xff]
    %v71 = vld [vmem:[%s0 + $0x40] sm:$0xff]
    %v72 = vld [vmem:[%s0 + $0x48] sm:$0xff]
    %v73 = vld [vmem:[%s0 + $0x50] sm:$0xff]
    %v74 = vld [vmem:[%s0 + $0x58] sm:$0xff]
    %v75 = vld [vmem:[%s0 + $0x60] sm:$0xff]
    %v76 = vld [vmem:[%s0 + $0x68] sm:$0xff]
    %v77 = vld [vmem:[%s0 + $0x70] sm:$0xff]
    %v78 = vld [vmem:[%s0 + $0x78] sm:$0xff]
    %v79 = vld [vmem:[%s1] sm:$0x1]
    %v81 = vperm.slane %v79, 0
    %83 = vmatpush.msra.mxu0 %v78
    %84 = vmatpush.msra.mxu0 %v77
    %85 = vmatpush.msra.mxu0 %v76
    %86 = vmatpush.msra.mxu0 %v75
    %87 = vmatpush.msra.mxu0 %v74
    %88 = vmatpush.msra.mxu0 %v73
    %89 = vmatpush.msra.mxu0 %v72
    %90 = vmatpush.msra.mxu0 %v71
    %91 = vmatpush.msra.mxu0 %v70
    %92 = vmatpush.msra.mxu0 %v69
    %93 = vmatpush.msra.mxu0 %v68
    %94 = vmatpush.msra.mxu0 %v67
    %95 = vmatpush.msra.mxu0 %v66
    %96 = vmatpush.msra.mxu0 %v65
    %97 = vmatpush.msra.mxu0 %v64
    %98 = vmatpush.msra.mxu0 %v63
    %99 = vmatmul.f32.gmra.mxu0 %v59
    %v100 = vpop.f32.mrf.mxu0
    %v101 = vadd.f32 %v81, %v100
    %102 = vmatmul.f32.gmra.mxu0 %v60
    %v103 = vpop.f32.mrf.mxu0
    %v104 = vadd.f32 %v81, %v103
    %105 = vmatmul.f32.gmra.mxu0 %v61
    %v106 = vpop.f32.mrf.mxu0
    %v107 = vadd.f32 %v81, %v106
    %108 = vmatmul.f32.gmra.mxu0 %v62
    %v109 = vpop.f32.mrf.mxu0
    %v110 = vadd.f32 %v81, %v109
    %111 = vdwg.mxu0
    %112 = vst [vmem:[#allocation7] sm:$0xff] %v101
    %113 = vst [vmem:[#allocation7 + $0x8] sm:$0xff] %v104
    %114 = vst [vmem:[#allocation7 + $0x10] sm:$0xff] %v107
    %115 = vst [vmem:[#allocation7 + $0x18] sm:$0xff] %v110
    // Predicated region
    $region14: #{patch_embed.2} parent=1 // pred_check
      _
    $region15: #{patch_embed.2} parent=1 // pred_check_branch
      %117 = sbr.rel (0) target = $region17
    $region16: #{patch_embed.2} parent=1 // pred_region
      %119 = vsyncadd [#allocation8], 0
      %s120 = sshll.u32 [#allocation7], 4
      %s121 = int_to_ptr.vmem [resolvable:$true] %s120
      %s122 = sshll.u32 %s4, 4
      %s123 = int_to_ptr.hbm [resolvable:$true] %s122
      %128 = dma.vmem_to_hbm [thread:$0]  %s121, 512, %s123, [#allocation8], 128, 128, 8
    $region17: #{patch_embed.2} parent=1 // pred_fallthru
      _
    // Predicated region
    $region18: #{patch_embed.2} parent=1 // pred_check
      _
    $region19: #{patch_embed.2} parent=1 // pred_check_branch
      %130 = sbr.rel (0) target = $region21
    $region20: #{patch_embed.2} parent=1 // pred_region
      %132 = dma.done [#allocation8], 512
    $region21: #{patch_embed.2} parent=1 // pred_fallthru
      _
    %133 = vsyncpa [#allocation8], 1

</llo_original>
